<compile_context>
chip_gen: v7x
topology: tpu7x:2x2x1
jax: 0.10.0
libtpu: 0.0.40
codegen_flags: <defaults>
</compile_context>

<pallas_src>
import math

import jax
import jax.numpy as jnp
from jax.experimental import pallas as pl
from jax.experimental.pallas import tpu as pltpu


# ----------------------------- parameter setup (glue) -----------------------------

def build_cos_sin_tables(dim_model: int, max_seq_len: int = 128, dtype=jnp.float32):
    """Deterministic equivalent of RotaryEleutherAI.__init__ buffers."""
    inv_freq = 1.0 / (10000.0 ** (jnp.arange(0, dim_model, 2, dtype=jnp.float32) / dim_model))
    t = jnp.arange(max_seq_len, dtype=jnp.float32)
    freqs = jnp.outer(t, inv_freq)                         # (max_seq, dim/2)
    cos = jnp.repeat(jnp.cos(freqs), 2, axis=-1)           # '... d -> ... (d 2)'
    sin = jnp.repeat(jnp.sin(freqs), 2, axis=-1)
    return cos.astype(dtype), sin.astype(dtype)


# ----------------------------------- kernel ---------------------------------------

def _make_rope_kernel(seq_block: bool):
    """seq_block=True : q/k blocks are (m, S, D); tables are the full (S, D), broadcast.
       seq_block=False: q/k blocks are (tR, D) slices of one sequence; the full (S, D)
                        tables are resident and sliced with pl.ds."""

    def kernel(cos_ref, sin_e_ref, q_ref, k_ref, oq_ref, ok_ref):
        if seq_block:
            cos = cos_ref[...]
            sin_e = sin_e_ref[...]
        else:
            tR = q_ref.shape[0]
            S = cos_ref.shape[0]
            if tR == S:
                cos = cos_ref[...]
                sin_e = sin_e_ref[...]
            else:
                start = pl.multiple_of((pl.program_id(0) * tR) % S, tR)
                cos = cos_ref[pl.ds(start, tR), :]
                sin_e = sin_e_ref[pl.ds(start, tR), :]

        d = cos.shape[-1]
        # sin_e: even lanes hold -sin, odd lanes are exact 0.  cos/sin are pairwise-
        # duplicated, so the odd-lane table is just a 1-lane roll of sin_e, negated:
        # only ONE sin table needs to be resident in VMEM.
        sin_o = -pltpu.roll(sin_e, 1, sin_e.ndim - 1)

        def apply(x_ref, o_ref):
            x = x_ref[...].astype(jnp.float32)
            ax = x.ndim - 1
            # rotate_half folded into pre-signed tables:
            #   even lane j: -x[j+1]*sin[j] -> roll(x, d-1)[j] * sin_e[j]
            #   odd  lane j:  x[j-1]*sin[j] -> roll(x, 1)[j]   * sin_o[j]
            # Wrap-around lanes of each roll are multiplied by exact zeros in the tables
            # (this also makes lane-packed layouts, D' = pack*D, correct).
            y = (x * cos
                 + pltpu.roll(x, d - 1, ax) * sin_e
                 + pltpu.roll(x, 1, ax) * sin_o)
            o_ref[...] = y.astype(o_ref.dtype)

        apply(q_ref, oq_ref)
        apply(k_ref, ok_ref)

    return kernel


# ------------------------------ tile selection helpers -----------------------------

def _divisors(n):
    out = set()
    i = 1
    while i * i <= n:
        if n % i == 0:
            out.add(i)
            out.add(n // i)
        i += 1
    return sorted(out)


def _vmem_capacity_bytes():
    try:
        info = pltpu.get_tpu_info()
        cap = getattr(info, "vmem_capacity_bytes", None)
        if cap:
            return int(cap)
    except Exception:
        pass
    return 64 << 20                       # conservative default (v7x per-TensorCore)


def _block_budget(vmem_cap):
    """(target_bytes, max_block_bytes) per stream block, sized against the chip's VMEM."""
    if vmem_cap <= (64 << 20):
        # v7x: 64 MiB / TC -> 4 streams x 2 bufs x 3 MiB + tables stays under ~48 MiB.
        return 2 << 20, 3 << 20
    # v5e / v6e: 128 MiB physical VMEM -> bigger blocks are safe (helps large dim_model).
    return 2 << 20, 6 << 20


def _select_row_tile(b_flat, seq, d, in_itemsize, out_itemsize, *,
                     target_bytes, max_block_bytes, min_grid=8, floor_bytes=256 << 10):
    """Pick rows-per-block tR (packed rows) such that
         - tR = m*seq with m | b_flat          (block spans whole sequences; always legal), or
         - tR | seq and tR sublane-aligned     (block is a slice of one sequence),
         - per-stream block bytes <= max_block_bytes (VMEM budget),
         - block bytes land near target_bytes (HBM-roofline sweet spot, 1-4 MiB),
         - the grid keeps >= min_grid steps on big problems (v7x megacore / pipeline ramp),
           but never shrinks blocks below floor_bytes (tiny problems: step overhead wins)."""
    rows = b_flat * seq
    sub = {4: 8, 2: 16, 1: 32}.get(in_itemsize, 8)
    row_bytes = d * max(in_itemsize, out_itemsize)
    total_bytes = rows * row_bytes

    cands = set()
    for m in _divisors(b_flat):
        cands.add(m * seq)                          # whole-sequence blocks
    for t in _divisors(seq):
        if t < seq and t % sub == 0:
            cands.add(t)                            # sequence-slice blocks

    feas = [c for c in cands if c * row_bytes <= max_block_bytes]
    if not feas:
        # TODO(synk): nothing fits the per-block budget (huge dim_model + unaligned seq);
        # take the smallest candidate and let the wrapper raise vmem_limit accordingly.
        return min(cands)

    tgt = min(target_bytes, max(floor_bytes, total_bytes // min_grid), max_block_bytes)
    under = [c for c in feas if c * row_bytes <= tgt]
    return max(under) if under else min(feas)


# ----------------------------------- wrapper ---------------------------------------

def rotary_eleutherai_forward(q, k, cos_cached, sin_cached, *, row_tile=None,
                              out_dtype=None, in_place=False, input_buffer_count=None):
    """Forward pass of RotaryEleutherAI for seq_dimension == -2 (the module default)."""
    # TODO(synk): seq_dimension == -3 branch (cos[:, None, :] broadcasting) not implemented.
    assert q.shape == k.shape and q.dtype == k.dtype
    D0 = q.shape[-1]
    S0 = q.shape[-2]
    assert D0 % 2 == 0, "rotary dim must be even"
    assert S0 <= cos_cached.shape[0], "seq longer than cached rotary table"

    # Output dtype defaults to the input dtype (pure-bandwidth op; f32 outputs for bf16
    # inputs would add ~33% HBM traffic).  For exact torch promotion semantics pass
    # out_dtype=jnp.promote_types(q.dtype, cos_cached.dtype).
    out_dtype = q.dtype if out_dtype is None else jnp.dtype(out_dtype)
    in_itemsize = jnp.dtype(q.dtype).itemsize
    out_itemsize = jnp.dtype(out_dtype).itemsize

    # ---- lane packing: dim_model < 128 -> pack 128//D consecutive positions per row so
    # stores are dense 128-lane vst instead of masked partial stores.
    pack = 1
    if D0 % 128 != 0 and 128 % D0 == 0 and S0 % (128 // D0) == 0:
        pack = 128 // D0
    D = D0 * pack
    S = S0 // pack

    lead = q.shape[:-2]
    Bf = math.prod(lead) if lead else 1
    R = Bf * S

    # ---- tables: slice to S0, pre-sign for folded rotate_half, pack, keep f32 for math ----
    cos = cos_cached[:S0, :].astype(jnp.float32)
    sin = sin_cached[:S0, :].astype(jnp.float32)
    lane = jnp.arange(D0) % 2
    sin_e = jnp.where(lane == 0, -sin, 0.0)         # even lanes: -sin ; odd lanes: exact 0
    cos = cos.reshape(S, D)
    sin_e = sin_e.reshape(S, D)

    vmem_cap = _vmem_capacity_bytes()
    target_bytes, max_block_bytes = _block_budget(vmem_cap)
    sub = {4: 8, 2: 16, 1: 32}.get(in_itemsize, 8)

    # ---- row tile (in packed rows) ----
    if row_tile is None:
        tR = _select_row_tile(Bf, S, D, in_itemsize, out_itemsize,
                              target_bytes=target_bytes, max_block_bytes=max_block_bytes)
    else:
        tR = int(row_tile)
        assert R % tR == 0, "row_tile must divide total rows"
        assert tR % S == 0 or (S % tR == 0 and tR % sub == 0), \
            "row_tile must be a multiple of seq, or a sublane-aligned divisor of seq"

    in_bufs = 2 if input_buffer_count is None else int(input_buffer_count)

    seq_block = (tR % S == 0)
    if seq_block:
        m = tR // S
        grid = (Bf // m,)
        q_in = q.reshape(Bf, S, D)
        k_in = k.reshape(Bf, S, D)
        x_shape = (Bf, S, D)
        x_block = (m, S, D)
        x_index = lambda i: (i, 0, 0)
    else:
        grid = (R // tR,)
        q_in = q.reshape(R, D)
        k_in = k.reshape(R, D)
        x_shape = (R, D)
        x_block = (tR, D)
        x_index = lambda i: (i, 0)

    # ---- VMEM accounting: q,k inputs x in_bufs, oq,ok outputs x 2, tables single-buffered ----
    blk_elems = tR * D
    tab_bytes = 2 * S * D * 4
    vmem_need = (2 * in_bufs * blk_elems * in_itemsize
                 + 2 * 2 * blk_elems * out_itemsize
                 + tab_bytes)
    vmem_limit = max(16 << 20, vmem_need + (4 << 20))
    vmem_limit = min(vmem_limit, vmem_cap - (8 << 20), 100 << 20)
    if vmem_limit < vmem_need + (1 << 20):
        # Pathological fallback (single huge block): give Mosaic as much as we dare.
        vmem_limit = min(vmem_need + (1 << 20), vmem_cap - (2 << 20))

    aliases = {}
    if in_place and out_dtype == q.dtype:
        aliases = {2: 0, 3: 1}            # q -> oq, k -> ok (no extra HBM allocation)

    def _call(single_buffer_tables):
        if single_buffer_tables:
            t_spec = pl.BlockSpec((S, D), lambda i: (0, 0), pipeline_mode=pl.Buffered(1))
        else:
            t_spec = pl.BlockSpec((S, D), lambda i: (0, 0))
        if input_buffer_count is None:
            xi_spec = pl.BlockSpec(x_block, x_index)
        else:
            xi_spec = pl.BlockSpec(x_block, x_index, pipeline_mode=pl.Buffered(in_bufs))
        xo_spec = pl.BlockSpec(x_block, x_index)
        return pl.pallas_call(
            _make_rope_kernel(seq_block),
            grid=grid,
            in_specs=[t_spec, t_spec, xi_spec, xi_spec],
            out_specs=(xo_spec, xo_spec),
            out_shape=(jax.ShapeDtypeStruct(x_shape, out_dtype),
                       jax.ShapeDtypeStruct(x_shape, out_dtype)),
            input_output_aliases=aliases,
            compiler_params=pltpu.CompilerParams(
                dimension_semantics=("parallel",),
                vmem_limit_bytes=int(vmem_limit)),
        )(cos, sin_e, q_in, k_in)

    try:
        oq, ok = _call(single_buffer_tables=True)
    except Exception:
        # Buffered(1) table specs unsupported on this build -> retry with default buffering.
        oq, ok = _call(single_buffer_tables=False)

    return oq.reshape(q.shape), ok.reshape(k.shape)


# ---------------------------- pure-JAX reference (check) ---------------------------

def _rotate_half_ref(x):
    x1 = x[..., 0::2]
    x2 = x[..., 1::2]
    return jnp.stack((-x2, x1), axis=-1).reshape(x.shape)


def _apply_rotary_ref(x, cos, sin, out_dtype=None):
    cos = cos[: x.shape[-2], :]
    sin = sin[: x.shape[-2], :]
    if out_dtype is None:
        out_dtype = x.dtype
    xf = x.astype(jnp.float32)
    return (xf * cos.astype(jnp.float32)
            + _rotate_half_ref(xf) * sin.astype(jnp.float32)).astype(out_dtype)


# ------------------------------------- main -----------------------------------------

if __name__ == "__main__":
    key = jax.random.PRNGKey(0)
    k1, k2, k3, k4, k5, k6 = jax.random.split(key, 6)

    D = 128
    cos_c, sin_c = build_cos_sin_tables(D, max_seq_len=128)

    # Case 1: module-default small shape (batch=2, seq=8, dim_model=128), f32, whole-seq blocks.
    B, S = 2, 8
    q = jax.random.normal(k1, (B, S, D), dtype=jnp.float32)
    kk = jax.random.normal(k2, (B, S, D), dtype=jnp.float32)
    oq, ok = rotary_eleutherai_forward(q, kk, cos_c, sin_c)
    jax.block_until_ready((oq, ok))
    assert jnp.allclose(oq, _apply_rotary_ref(q, cos_c, sin_c), atol=1e-5, rtol=1e-5), "q mismatch (case 1)"
    assert jnp.allclose(ok, _apply_rotary_ref(kk, cos_c, sin_c), atol=1e-5, rtol=1e-5), "k mismatch (case 1)"

    # Case 2: resident-table + in-kernel pl.ds slice path (row_tile < seq).
    B2, S2 = 2, 128
    q2 = jax.random.normal(k3, (B2, S2, D), dtype=jnp.float32)
    kk2 = jax.random.normal(k4, (B2, S2, D), dtype=jnp.float32)
    oq2, ok2 = rotary_eleutherai_forward(q2, kk2, cos_c, sin_c, row_tile=32)
    jax.block_until_ready((oq2, ok2))
    assert jnp.allclose(oq2, _apply_rotary_ref(q2, cos_c, sin_c), atol=1e-5, rtol=1e-5), "q mismatch (case 2)"
    assert jnp.allclose(ok2, _apply_rotary_ref(kk2, cos_c, sin_c), atol=1e-5, rtol=1e-5), "k mismatch (case 2)"

    # Case 3: bf16 activations (f32 tables, f32 math in-kernel, bf16 outputs — no promotion).
    qb = q2.astype(jnp.bfloat16)
    kb = kk2.astype(jnp.bfloat16)
    oqb, okb = rotary_eleutherai_forward(qb, kb, cos_c, sin_c)
    jax.block_until_ready((oqb, okb))
    assert oqb.dtype == jnp.bfloat16 and okb.dtype == jnp.bfloat16
    assert jnp.allclose(oqb.astype(jnp.float32),
                        _apply_rotary_ref(qb, cos_c, sin_c).astype(jnp.float32),
                        atol=2e-2, rtol=2e-2), "q mismatch (case 3)"
    assert jnp.allclose(okb.astype(jnp.float32),
                        _apply_rotary_ref(kb, cos_c, sin_c).astype(jnp.float32),
                        atol=2e-2, rtol=2e-2), "k mismatch (case 3)"

    # Case 4: dim_model < 128 -> lane-packing path (2 positions per 128-lane row), f32.
    D4, B4, S4 = 64, 2, 16
    cos4, sin4 = build_cos_sin_tables(D4, max_seq_len=128)
    q4 = jax.random.normal(k5, (B4, S4, D4), dtype=jnp.float32)
    kk4 = jax.random.normal(k6, (B4, S4, D4), dtype=jnp.float32)
    oq4, ok4 = rotary_eleutherai_forward(q4, kk4, cos4, sin4)
    jax.block_until_ready((oq4, ok4))
    assert jnp.allclose(oq4, _apply_rotary_ref(q4, cos4, sin4), atol=1e-5, rtol=1e-5), "q mismatch (case 4)"
    assert jnp.allclose(ok4, _apply_rotary_ref(kk4, cos4, sin4), atol=1e-5, rtol=1e-5), "k mismatch (case 4)"

    print("KERNEL_OK")
</pallas_src>

<mosaic_0001>
module attributes {stable_mosaic.version = 11 : i64} {
  func.func @kernel(%arg0: i32, %arg1: memref<8x128xf32, #tpu.memory_space<vmem>>, %arg2: memref<8x128xf32, #tpu.memory_space<vmem>>, %arg3: memref<2x8x128xf32, #tpu.memory_space<vmem>>, %arg4: memref<2x8x128xf32, #tpu.memory_space<vmem>>, %arg5: memref<2x8x128xf32, #tpu.memory_space<vmem>>, %arg6: memref<2x8x128xf32, #tpu.memory_space<vmem>>) attributes {dimension_semantics = [#tpu.dimension_semantics<parallel>], iteration_bounds = array<i64: 1>, scalar_prefetch = 0 : i64, scratch_operands = 0 : i64, tpu.core_type = #tpu.core_type<tc>, window_params = [{pipeline_mode = #tpu.pipeline_mode<synchronous>, transform_indices = @transform_0, window_bounds = array<i64: 8, 128>}, {pipeline_mode = #tpu.pipeline_mode<synchronous>, transform_indices = @transform_1, window_bounds = array<i64: 8, 128>}, {transform_indices = @transform_2, window_bounds = array<i64: 2, 8, 128>}, {transform_indices = @transform_3, window_bounds = array<i64: 2, 8, 128>}, {transform_indices = @transform_4, window_bounds = array<i64: 2, 8, 128>}, {transform_indices = @transform_5, window_bounds = array<i64: 2, 8, 128>}]} {
    %c0 = arith.constant 0 : index
    %c0_0 = arith.constant 0 : index
    %0 = vector.load %arg1[%c0, %c0_0] : memref<8x128xf32, #tpu.memory_space<vmem>>, vector<8x128xf32>
    %c0_1 = arith.constant 0 : index
    %c0_2 = arith.constant 0 : index
    %1 = vector.load %arg2[%c0_1, %c0_2] : memref<8x128xf32, #tpu.memory_space<vmem>>, vector<8x128xf32>
    %c1_i32 = arith.constant 1 : i32
    %2 = tpu.dynamic_rotate %1 by %c1_i32 dim 1 : vector<8x128xf32>, i32 -> vector<8x128xf32>
    %cst = arith.constant 0.000000e+00 : f32
    %3 = vector.broadcast %cst : f32 to vector<8x128xf32>
    %4 = arith.subf %3, %2 : vector<8x128xf32>
    %c0_3 = arith.constant 0 : index
    %c0_4 = arith.constant 0 : index
    %c0_5 = arith.constant 0 : index
    %5 = vector.load %arg3[%c0_3, %c0_4, %c0_5] : memref<2x8x128xf32, #tpu.memory_space<vmem>>, vector<2x8x128xf32>
    %6 = vector.shape_cast %0 : vector<8x128xf32> to vector<1x8x128xf32>
    %7 = vector.broadcast %6 : vector<1x8x128xf32> to vector<2x8x128xf32>
    %8 = arith.mulf %5, %7 : vector<2x8x128xf32>
    %c127_i32 = arith.constant 127 : i32
    %9 = tpu.dynamic_rotate %5 by %c127_i32 dim 2 : vector<2x8x128xf32>, i32 -> vector<2x8x128xf32>
    %10 = vector.shape_cast %1 : vector<8x128xf32> to vector<1x8x128xf32>
    %11 = vector.broadcast %10 : vector<1x8x128xf32> to vector<2x8x128xf32>
    %12 = arith.mulf %9, %11 : vector<2x8x128xf32>
    %13 = arith.addf %8, %12 : vector<2x8x128xf32>
    %c1_i32_6 = arith.constant 1 : i32
    %14 = tpu.dynamic_rotate %5 by %c1_i32_6 dim 2 : vector<2x8x128xf32>, i32 -> vector<2x8x128xf32>
    %15 = vector.shape_cast %4 : vector<8x128xf32> to vector<1x8x128xf32>
    %16 = vector.broadcast %15 : vector<1x8x128xf32> to vector<2x8x128xf32>
    %17 = arith.mulf %14, %16 : vector<2x8x128xf32>
    %18 = arith.addf %13, %17 : vector<2x8x128xf32>
    %c0_7 = arith.constant 0 : index
    %c0_8 = arith.constant 0 : index
    %c0_9 = arith.constant 0 : index
    %19 = vector.load %arg5[%c0_7, %c0_8, %c0_9] : memref<2x8x128xf32, #tpu.memory_space<vmem>>, vector<2x8x128xf32>
    tpu.vector_store %arg5[%c0_7, %c0_8, %c0_9], %18 {strides = array<i32>} : memref<2x8x128xf32, #tpu.memory_space<vmem>>, vector<2x8x128xf32>,
    %c0_10 = arith.constant 0 : index
    %c0_11 = arith.constant 0 : index
    %c0_12 = arith.constant 0 : index
    %20 = vector.load %arg4[%c0_10, %c0_11, %c0_12] : memref<2x8x128xf32, #tpu.memory_space<vmem>>, vector<2x8x128xf32>
    %21 = vector.shape_cast %0 : vector<8x128xf32> to vector<1x8x128xf32>
    %22 = vector.broadcast %21 : vector<1x8x128xf32> to vector<2x8x128xf32>
    %23 = arith.mulf %20, %22 : vector<2x8x128xf32>
    %c127_i32_13 = arith.constant 127 : i32
    %24 = tpu.dynamic_rotate %20 by %c127_i32_13 dim 2 : vector<2x8x128xf32>, i32 -> vector<2x8x128xf32>
    %25 = vector.shape_cast %1 : vector<8x128xf32> to vector<1x8x128xf32>
    %26 = vector.broadcast %25 : vector<1x8x128xf32> to vector<2x8x128xf32>
    %27 = arith.mulf %24, %26 : vector<2x8x128xf32>
    %28 = arith.addf %23, %27 : vector<2x8x128xf32>
    %c1_i32_14 = arith.constant 1 : i32
    %29 = tpu.dynamic_rotate %20 by %c1_i32_14 dim 2 : vector<2x8x128xf32>, i32 -> vector<2x8x128xf32>
    %30 = vector.shape_cast %4 : vector<8x128xf32> to vector<1x8x128xf32>
    %31 = vector.broadcast %30 : vector<1x8x128xf32> to vector<2x8x128xf32>
    %32 = arith.mulf %29, %31 : vector<2x8x128xf32>
    %33 = arith.addf %28, %32 : vector<2x8x128xf32>
    %c0_15 = arith.constant 0 : index
    %c0_16 = arith.constant 0 : index
    %c0_17 = arith.constant 0 : index
    %34 = vector.load %arg6[%c0_15, %c0_16, %c0_17] : memref<2x8x128xf32, #tpu.memory_space<vmem>>, vector<2x8x128xf32>
    tpu.vector_store %arg6[%c0_15, %c0_16, %c0_17], %33 {strides = array<i32>} : memref<2x8x128xf32, #tpu.memory_space<vmem>>, vector<2x8x128xf32>,
    return
  }
  func.func @transform_0(%arg0: i32) -> (i32, i32) {
    %c0_i32 = arith.constant 0 : i32
    %c0_i32_0 = arith.constant 0 : i32
    %c0_i32_1 = arith.constant 0 : i32
    return %c0_i32, %c0_i32_0 : i32, i32
  }
  func.func @transform_1(%arg0: i32) -> (i32, i32) {
    %c0_i32 = arith.constant 0 : i32
    %c0_i32_0 = arith.constant 0 : i32
    %c0_i32_1 = arith.constant 0 : i32
    return %c0_i32, %c0_i32_0 : i32, i32
  }
  func.func @transform_2(%arg0: i32) -> (i32, i32, i32) {
    %c0_i32 = arith.constant 0 : i32
    %c0_i32_0 = arith.constant 0 : i32
    %c0_i32_1 = arith.constant 0 : i32
    return %arg0, %c0_i32, %c0_i32_0 : i32, i32, i32
  }
  func.func @transform_3(%arg0: i32) -> (i32, i32, i32) {
    %c0_i32 = arith.constant 0 : i32
    %c0_i32_0 = arith.constant 0 : i32
    %c0_i32_1 = arith.constant 0 : i32
    return %arg0, %c0_i32, %c0_i32_0 : i32, i32, i32
  }
  func.func @transform_4(%arg0: i32) -> (i32, i32, i32) {
    %c0_i32 = arith.constant 0 : i32
    %c0_i32_0 = arith.constant 0 : i32
    %c0_i32_1 = arith.constant 0 : i32
    return %arg0, %c0_i32, %c0_i32_0 : i32, i32, i32
  }
  func.func @transform_5(%arg0: i32) -> (i32, i32, i32) {
    %c0_i32 = arith.constant 0 : i32
    %c0_i32_0 = arith.constant 0 : i32
    %c0_i32_1 = arith.constant 0 : i32
    return %arg0, %c0_i32, %c0_i32_0 : i32, i32, i32
  }
}

module attributes {stable_mosaic.version = 11 : i64} {
  func.func @kernel(%arg0: i32, %arg1: memref<8x128xf32, #tpu.memory_space<vmem>>, %arg2: memref<8x128xf32, #tpu.memory_space<vmem>>, %arg3: memref<2x8x128xf32, #tpu.memory_space<vmem>>, %arg4: memref<2x8x128xf32, #tpu.memory_space<vmem>>, %arg5: memref<2x8x128xf32, #tpu.memory_space<vmem>>, %arg6: memref<2x8x128xf32, #tpu.memory_space<vmem>>) attributes {dimension_semantics = [#tpu.dimension_semantics<parallel>], iteration_bounds = array<i64: 1>, scalar_prefetch = 0 : i64, scratch_operands = 0 : i64, tpu.core_type = #tpu.core_type<tc>, window_params = [{pipeline_mode = #tpu.pipeline_mode<synchronous>, transform_indices = @transform_0, window_bounds = array<i64: 8, 128>}, {pipeline_mode = #tpu.pipeline_mode<synchronous>, transform_indices = @transform_1, window_bounds = array<i64: 8, 128>}, {transform_indices = @transform_2, window_bounds = array<i64: 2, 8, 128>}, {transform_indices = @transform_3, window_bounds = array<i64: 2, 8, 128>}, {transform_indices = @transform_4, window_bounds = array<i64: 2, 8, 128>}, {transform_indices = @transform_5, window_bounds = array<i64: 2, 8, 128>}]} {
    %c0 = arith.constant 0 : index
    %c0_0 = arith.constant 0 : index
    %0 = vector.load %arg1[%c0, %c0_0] : memref<8x128xf32, #tpu.memory_space<vmem>>, vector<8x128xf32>
    %c0_1 = arith.constant 0 : index
    %c0_2 = arith.constant 0 : index
    %1 = vector.load %arg2[%c0_1, %c0_2] : memref<8x128xf32, #tpu.memory_space<vmem>>, vector<8x128xf32>
    %c1_i32 = arith.constant 1 : i32
    %2 = tpu.dynamic_rotate %1 by %c1_i32 dim 1 : vector<8x128xf32>, i32 -> vector<8x128xf32>
    %cst = arith.constant 0.000000e+00 : f32
    %3 = vector.broadcast %cst : f32 to vector<8x128xf32>
    %4 = arith.subf %3, %2 : vector<8x128xf32>
    %c0_3 = arith.constant 0 : index
    %c0_4 = arith.constant 0 : index
    %c0_5 = arith.constant 0 : index
    %5 = vector.load %arg3[%c0_3, %c0_4, %c0_5] : memref<2x8x128xf32, #tpu.memory_space<vmem>>, vector<2x8x128xf32>
    %6 = vector.shape_cast %0 : vector<8x128xf32> to vector<1x8x128xf32>
    %7 = vector.broadcast %6 : vector<1x8x128xf32> to vector<2x8x128xf32>
    %8 = arith.mulf %5, %7 : vector<2x8x128xf32>
    %c127_i32 = arith.constant 127 : i32
    %9 = tpu.dynamic_rotate %5 by %c127_i32 dim 2 : vector<2x8x128xf32>, i32 -> vector<2x8x128xf32>
    %10 = vector.shape_cast %1 : vector<8x128xf32> to vector<1x8x128xf32>
    %11 = vector.broadcast %10 : vector<1x8x128xf32> to vector<2x8x128xf32>
    %12 = arith.mulf %9, %11 : vector<2x8x128xf32>
    %13 = arith.addf %8, %12 : vector<2x8x128xf32>
    %c1_i32_6 = arith.constant 1 : i32
    %14 = tpu.dynamic_rotate %5 by %c1_i32_6 dim 2 : vector<2x8x128xf32>, i32 -> vector<2x8x128xf32>
    %15 = vector.shape_cast %4 : vector<8x128xf32> to vector<1x8x128xf32>
    %16 = vector.broadcast %15 : vector<1x8x128xf32> to vector<2x8x128xf32>
    %17 = arith.mulf %14, %16 : vector<2x8x128xf32>
    %18 = arith.addf %13, %17 : vector<2x8x128xf32>
    %c0_7 = arith.constant 0 : index
    %c0_8 = arith.constant 0 : index
    %c0_9 = arith.constant 0 : index
    %19 = vector.load %arg5[%c0_7, %c0_8, %c0_9] : memref<2x8x128xf32, #tpu.memory_space<vmem>>, vector<2x8x128xf32>
    tpu.vector_store %arg5[%c0_7, %c0_8, %c0_9], %18 {strides = array<i32>} : memref<2x8x128xf32, #tpu.memory_space<vmem>>, vector<2x8x128xf32>,
    %c0_10 = arith.constant 0 : index
    %c0_11 = arith.constant 0 : index
    %c0_12 = arith.constant 0 : index
    %20 = vector.load %arg4[%c0_10, %c0_11, %c0_12] : memref<2x8x128xf32, #tpu.memory_space<vmem>>, vector<2x8x128xf32>
    %21 = vector.shape_cast %0 : vector<8x128xf32> to vector<1x8x128xf32>
    %22 = vector.broadcast %21 : vector<1x8x128xf32> to vector<2x8x128xf32>
    %23 = arith.mulf %20, %22 : vector<2x8x128xf32>
    %c127_i32_13 = arith.constant 127 : i32
    %24 = tpu.dynamic_rotate %20 by %c127_i32_13 dim 2 : vector<2x8x128xf32>, i32 -> vector<2x8x128xf32>
    %25 = vector.shape_cast %1 : vector<8x128xf32> to vector<1x8x128xf32>
    %26 = vector.broadcast %25 : vector<1x8x128xf32> to vector<2x8x128xf32>
    %27 = arith.mulf %24, %26 : vector<2x8x128xf32>
    %28 = arith.addf %23, %27 : vector<2x8x128xf32>
    %c1_i32_14 = arith.constant 1 : i32
    %29 = tpu.dynamic_rotate %20 by %c1_i32_14 dim 2 : vector<2x8x128xf32>, i32 -> vector<2x8x128xf32>
    %30 = vector.shape_cast %4 : vector<8x128xf32> to vector<1x8x128xf32>
    %31 = vector.broadcast %30 : vector<1x8x128xf32> to vector<2x8x128xf32>
    %32 = arith.mulf %29, %31 : vector<2x8x128xf32>
    %33 = arith.addf %28, %32 : vector<2x8x128xf32>
    %c0_15 = arith.constant 0 : index
    %c0_16 = arith.constant 0 : index
    %c0_17 = arith.constant 0 : index
    %34 = vector.load %arg6[%c0_15, %c0_16, %c0_17] : memref<2x8x128xf32, #tpu.memory_space<vmem>>, vector<2x8x128xf32>
    tpu.vector_store %arg6[%c0_15, %c0_16, %c0_17], %33 {strides = array<i32>} : memref<2x8x128xf32, #tpu.memory_space<vmem>>, vector<2x8x128xf32>,
    return
  }
  func.func @transform_0(%arg0: i32) -> (i32, i32) {
    %c0_i32 = arith.constant 0 : i32
    %c0_i32_0 = arith.constant 0 : i32
    %c0_i32_1 = arith.constant 0 : i32
    return %c0_i32, %c0_i32_0 : i32, i32
  }
  func.func @transform_1(%arg0: i32) -> (i32, i32) {
    %c0_i32 = arith.constant 0 : i32
    %c0_i32_0 = arith.constant 0 : i32
    %c0_i32_1 = arith.constant 0 : i32
    return %c0_i32, %c0_i32_0 : i32, i32
  }
  func.func @transform_2(%arg0: i32) -> (i32, i32, i32) {
    %c0_i32 = arith.constant 0 : i32
    %c0_i32_0 = arith.constant 0 : i32
    %c0_i32_1 = arith.constant 0 : i32
    return %arg0, %c0_i32, %c0_i32_0 : i32, i32, i32
  }
  func.func @transform_3(%arg0: i32) -> (i32, i32, i32) {
    %c0_i32 = arith.constant 0 : i32
    %c0_i32_0 = arith.constant 0 : i32
    %c0_i32_1 = arith.constant 0 : i32
    return %arg0, %c0_i32, %c0_i32_0 : i32, i32, i32
  }
  func.func @transform_4(%arg0: i32) -> (i32, i32, i32) {
    %c0_i32 = arith.constant 0 : i32
    %c0_i32_0 = arith.constant 0 : i32
    %c0_i32_1 = arith.constant 0 : i32
    return %arg0, %c0_i32, %c0_i32_0 : i32, i32, i32
  }
  func.func @transform_5(%arg0: i32) -> (i32, i32, i32) {
    %c0_i32 = arith.constant 0 : i32
    %c0_i32_0 = arith.constant 0 : i32
    %c0_i32_1 = arith.constant 0 : i32
    return %arg0, %c0_i32, %c0_i32_0 : i32, i32, i32
  }
}

</mosaic_0001>

<llo_original>
// kernel: tpu_custom_call.1
$region0: #{tpu_custom_call.1}
  #allocation0 [shape = 'u32[]', space=smem, size = 0x4, offset = 0x4, fixed_abs, tag = 'smem constant byte address 0x4 - core index']
  #allocation1 [shape = 'u32[144,128]{1,0:T(1,128)}', space=vmem, size = 0x12000, scoped, tag = 'internal scratch']
  %s0 = inlined_call_operand.hbm [shape: f32[8,128], index: 0, kind: input, shape index: {}]
  %s1 = inlined_call_operand.hbm [shape: f32[8,128], index: 1, kind: input, shape index: {}]
  %s2 = inlined_call_operand.hbm [shape: f32[2,8,128], index: 2, kind: input, shape index: {}]
  %s3 = inlined_call_operand.hbm [shape: f32[2,8,128], index: 3, kind: input, shape index: {}]
  %s4 = inlined_call_operand.hbm [shape: f32[2,8,128], index: 4, kind: output, shape index: {0}]
  %s5 = inlined_call_operand.hbm [shape: f32[2,8,128], index: 5, kind: output, shape index: {1}]
  %6 = xla_tuple %s4, %s5
  %s7 = sld [smem:[#allocation0]]
  $region50: #{tpu_custom_call.1} parent=0
    _
  %s9 = ssub.s32 1, %s7
  %s10 = scalar_select 0, %s9, %s7
  $region1: #{tpu_custom_call.1} parent=0
    #allocation2 [shape = 'u8[4096]{0}', space=vmem, size = 0x1000, scoped, tag = 'input window, operand 0, single buffered']
    #allocation3 [shape = 's32[1]{0}', space=sflag, size = 0x4, scoped, tag = 'scoped memory for tpu_custom_call.1']
    #allocation4 [shape = 's32[1]{0}', space=sflag, size = 0x4, scoped, tag = 'scoped memory for tpu_custom_call.1']
    #allocation5 [shape = 'u8[4096]{0}', space=vmem, size = 0x1000, scoped, tag = 'input window, operand 1, single buffered']
    #allocation6 [shape = 's32[1]{0}', space=sflag, size = 0x4, scoped, tag = 'scoped memory for tpu_custom_call.1']
    #allocation7 [shape = 'u8[8192]{0}', space=vmem, size = 0x2000, scoped, tag = 'input window, operand 2, single buffered']
    #allocation8 [shape = 'u8[8192]{0}', space=vmem, size = 0x2000, scoped, tag = 'input window, operand 3, single buffered']
    #allocation9 [shape = 's32[1]{0}', space=sflag, size = 0x4, scoped, tag = 'scoped memory for tpu_custom_call.1']
    #allocation10 [shape = 'u8[8192]{0}', space=vmem, size = 0x2000, scoped, tag = 'output window, operand 0, single buffered']
    #allocation11 [shape = 'u8[8192]{0}', space=vmem, size = 0x2000, scoped, tag = 'output window, operand 1, single buffered']
    #allocation12 [shape = 's32[1]{0}', space=sflag, size = 0x4, scoped, tag = 'scoped memory for tpu_custom_call.1']
    %11 = vsyncpa [#allocation3], 0
    %12 = vsyncpa [#allocation6], 0
    %13 = vsyncpa [#allocation9], 0
    %14 = vsyncpa [#allocation4], 0
    %15 = vsyncpa [#allocation12], 0
    // Predicated region
    $region2: #{tpu_custom_call.1} parent=1 // pred_check
      _
    $region3: #{tpu_custom_call.1} parent=1 // pred_check_branch
      %17 = sbr.rel (0) target = $region5
    $region4: #{tpu_custom_call.1} parent=1 // pred_region
      %s19 = ssub.s32 128, 128
      %20 = vsyncadd [#allocation3], %s19
      %s22 = sshll.u32 [#allocation2], 4
      %s23 = int_to_ptr.vmem [resolvable:$true] %s22
      %25 = dma.hbm_to_vmem [thread:$0]  %s0, 128, %s23, [#allocation3]
    $region5: #{tpu_custom_call.1} parent=1 // pred_fallthru
      _
    // Predicated region
    $region6: #{tpu_custom_call.1} parent=1 // pred_check
      _
    $region7: #{tpu_custom_call.1} parent=1 // pred_check_branch
      %27 = sbr.rel (0) target = $region9
    $region8: #{tpu_custom_call.1} parent=1 // pred_region
      %s29 = ssub.s32 128, 128
      %30 = vsyncadd [#allocation6], %s29
      %s32 = sshll.u32 [#allocation5], 4
      %s33 = int_to_ptr.vmem [resolvable:$true] %s32
      %35 = dma.hbm_to_vmem [thread:$0]  %s1, 128, %s33, [#allocation6]
    $region9: #{tpu_custom_call.1} parent=1 // pred_fallthru
      _
    // Predicated region
    $region10: #{tpu_custom_call.1} parent=1 // pred_check
      _
    $region11: #{tpu_custom_call.1} parent=1 // pred_check_branch
      %37 = sbr.rel (0) target = $region13
    $region12: #{tpu_custom_call.1} parent=1 // pred_region
      %s39 = ssub.s32 256, 256
      %40 = vsyncadd [#allocation6], %s39
      %s41 = sshll.u32 [#allocation7], 4
      %s42 = int_to_ptr.vmem [resolvable:$true] %s41
      %47 = dma.hbm_to_vmem [thread:$0]  %s2, 256, %s42, [#allocation6], 128, 128, 8
    $region13: #{tpu_custom_call.1} parent=1 // pred_fallthru
      _
    // Predicated region
    $region14: #{tpu_custom_call.1} parent=1 // pred_check
      _
    $region15: #{tpu_custom_call.1} parent=1 // pred_check_branch
      %49 = sbr.rel (0) target = $region17
    $region16: #{tpu_custom_call.1} parent=1 // pred_region
      %s51 = ssub.s32 256, 256
      %52 = vsyncadd [#allocation9], %s51
      %s53 = sshll.u32 [#allocation8], 4
      %s54 = int_to_ptr.vmem [resolvable:$true] %s53
      %59 = dma.hbm_to_vmem [thread:$0]  %s3, 256, %s54, [#allocation9], 128, 128, 8
    $region17: #{tpu_custom_call.1} parent=1 // pred_fallthru
      _
    // Predicated region
    $region18: #{tpu_custom_call.1} parent=1 // pred_check
      _
    $region19: #{tpu_custom_call.1} parent=1 // pred_check_branch
      %61 = sbr.rel (0) target = $region21
    $region20: #{tpu_custom_call.1} parent=1 // pred_region
      %62 = dma.done [#allocation3], 128
    $region21: #{tpu_custom_call.1} parent=1 // pred_fallthru
      _
    // Predicated region
    $region22: #{tpu_custom_call.1} parent=1 // pred_check
      _
    $region23: #{tpu_custom_call.1} parent=1 // pred_check_branch
      %64 = sbr.rel (0) target = $region25
    $region24: #{tpu_custom_call.1} parent=1 // pred_region
      %65 = dma.done [#allocation6], 128
    $region25: #{tpu_custom_call.1} parent=1 // pred_fallthru
      _
    // Predicated region
    $region26: #{tpu_custom_call.1} parent=1 // pred_check
      _
    $region27: #{tpu_custom_call.1} parent=1 // pred_check_branch
      %67 = sbr.rel (0) target = $region29
    $region28: #{tpu_custom_call.1} parent=1 // pred_region
      %68 = dma.done [#allocation6], 256
    $region29: #{tpu_custom_call.1} parent=1 // pred_fallthru
      _
    // Predicated region
    $region30: #{tpu_custom_call.1} parent=1 // pred_check
      _
    $region31: #{tpu_custom_call.1} parent=1 // pred_check_branch
      %70 = sbr.rel (0) target = $region33
    $region32: #{tpu_custom_call.1} parent=1 // pred_region
      %71 = dma.done [#allocation9], 256
    $region33: #{tpu_custom_call.1} parent=1 // pred_fallthru
      _
    %v72 = vld [vmem:[#allocation2] sm:$0xff]
    %v73 = vld [vmem:[#allocation5] sm:$0xff]
    %74 = vrot.lane.b32.xlu0 %v73, 1
    %v75 = vpop.permute.xlu0 %74
    %v76 = vsub.f32 0.0, %v75
    %v77 = vld [vmem:[#allocation7] sm:$0xff]
    %v78 = vld [vmem:[#allocation7 + $0x8] sm:$0xff]
    %v79 = vmul.f32 %v77, %v72
    %v80 = vmul.f32 %v78, %v72
    %81 = vrot.lane.b32.xlu0 %v77, 127
    %v82 = vpop.permute.xlu0 %81
    %83 = vrot.lane.b32.xlu0 %v78, 127
    %v84 = vpop.permute.xlu0 %83
    %v85 = vmul.f32 %v82, %v73
    %v86 = vmul.f32 %v84, %v73
    %v87 = vadd.f32 %v79, %v85
    %v88 = vadd.f32 %v80, %v86
    %89 = vrot.lane.b32.xlu0 %v77, 1
    %v90 = vpop.permute.xlu0 %89
    %91 = vrot.lane.b32.xlu0 %v78, 1
    %v92 = vpop.permute.xlu0 %91
    %v93 = vmul.f32 %v90, %v76
    %v94 = vmul.f32 %v92, %v76
    %v95 = vadd.f32 %v87, %v93
    %v96 = vadd.f32 %v88, %v94
    %97 = vst [vmem:[#allocation10] sm:$0xff] %v95
    %98 = vst [vmem:[#allocation10 + $0x8] sm:$0xff] %v96
    %v99 = vld [vmem:[#allocation8] sm:$0xff]
    %v100 = vld [vmem:[#allocation8 + $0x8] sm:$0xff]
    %v101 = vmul.f32 %v99, %v72
    %v102 = vmul.f32 %v100, %v72
    %103 = vrot.lane.b32.xlu0 %v99, 127
    %v104 = vpop.permute.xlu0 %103
    %105 = vrot.lane.b32.xlu0 %v100, 127
    %v106 = vpop.permute.xlu0 %105
    %v107 = vmul.f32 %v104, %v73
    %v108 = vmul.f32 %v106, %v73
    %v109 = vadd.f32 %v101, %v107
    %v110 = vadd.f32 %v102, %v108
    %111 = vrot.lane.b32.xlu0 %v99, 1
    %v112 = vpop.permute.xlu0 %111
    %113 = vrot.lane.b32.xlu0 %v100, 1
    %v114 = vpop.permute.xlu0 %113
    %v115 = vmul.f32 %v112, %v76
    %v116 = vmul.f32 %v114, %v76
    %v117 = vadd.f32 %v109, %v115
    %v118 = vadd.f32 %v110, %v116
    %119 = vst [vmem:[#allocation11] sm:$0xff] %v117
    %120 = vst [vmem:[#allocation11 + $0x8] sm:$0xff] %v118
    // Predicated region
    $region34: #{tpu_custom_call.1} parent=1 // pred_check
      _
    $region35: #{tpu_custom_call.1} parent=1 // pred_check_branch
      %122 = sbr.rel (0) target = $region37
    $region36: #{tpu_custom_call.1} parent=1 // pred_region
      %s124 = ssub.s32 256, 256
      %125 = vsyncadd [#allocation4], %s124
      %s126 = sshll.u32 [#allocation10], 4
      %s127 = int_to_ptr.vmem [resolvable:$true] %s126
      %132 = dma.vmem_to_hbm [thread:$0]  %s127, 256, %s4, [#allocation4], 128, 128, 8
    $region37: #{tpu_custom_call.1} parent=1 // pred_fallthru
      _
    // Predicated region
    $region38: #{tpu_custom_call.1} parent=1 // pred_check
      _
    $region39: #{tpu_custom_call.1} parent=1 // pred_check_branch
      %134 = sbr.rel (0) target = $region41
    $region40: #{tpu_custom_call.1} parent=1 // pred_region
      %s136 = ssub.s32 256, 256
      %137 = vsyncadd [#allocation12], %s136
      %s138 = sshll.u32 [#allocation11], 4
      %s139 = int_to_ptr.vmem [resolvable:$true] %s138
      %144 = dma.vmem_to_hbm [thread:$0]  %s139, 256, %s5, [#allocation12], 128, 128, 8
    $region41: #{tpu_custom_call.1} parent=1 // pred_fallthru
      _
    // Predicated region
    $region42: #{tpu_custom_call.1} parent=1 // pred_check
      _
    $region43: #{tpu_custom_call.1} parent=1 // pred_check_branch
      %146 = sbr.rel (0) target = $region45
    $region44: #{tpu_custom_call.1} parent=1 // pred_region
      %147 = dma.done [#allocation4], 256
    $region45: #{tpu_custom_call.1} parent=1 // pred_fallthru
      _
    // Predicated region
    $region46: #{tpu_custom_call.1} parent=1 // pred_check
      _
    $region47: #{tpu_custom_call.1} parent=1 // pred_check_branch
      %149 = sbr.rel (0) target = $region49
    $region48: #{tpu_custom_call.1} parent=1 // pred_region
      %150 = dma.done [#allocation12], 256
    $region49: #{tpu_custom_call.1} parent=1 // pred_fallthru
      _
    %151 = vsyncpa [#allocation3], 1
    %152 = vsyncpa [#allocation6], 1
    %153 = vsyncpa [#allocation9], 1
    %154 = vsyncpa [#allocation4], 1
    %155 = vsyncpa [#allocation12], 1

// kernel: tpu_custom_call.1
$region0: #{tpu_custom_call.1}
  #allocation0 [shape = 'u32[]', space=smem, size = 0x4, offset = 0x4, fixed_abs, tag = 'smem constant byte address 0x4 - core index']
  #allocation1 [shape = 'u32[144,128]{1,0:T(1,128)}', space=vmem, size = 0x12000, scoped, tag = 'internal scratch']
  %s0 = inlined_call_operand.hbm [shape: f32[8,128], index: 0, kind: input, shape index: {}]
  %s1 = inlined_call_operand.hbm [shape: f32[8,128], index: 1, kind: input, shape index: {}]
  %s2 = inlined_call_operand.hbm [shape: f32[2,8,128], index: 2, kind: input, shape index: {}]
  %s3 = inlined_call_operand.hbm [shape: f32[2,8,128], index: 3, kind: input, shape index: {}]
  %s4 = inlined_call_operand.hbm [shape: f32[2,8,128], index: 4, kind: output, shape index: {0}]
  %s5 = inlined_call_operand.hbm [shape: f32[2,8,128], index: 5, kind: output, shape index: {1}]
  %6 = xla_tuple %s4, %s5
  %s7 = sld [smem:[#allocation0]]
  $region50: #{tpu_custom_call.1} parent=0
    _
  %s9 = ssub.s32 1, %s7
  %s10 = scalar_select 0, %s9, %s7
  $region1: #{tpu_custom_call.1} parent=0
    #allocation2 [shape = 'u8[4096]{0}', space=vmem, size = 0x1000, scoped, tag = 'input window, operand 0, single buffered']
    #allocation3 [shape = 's32[1]{0}', space=sflag, size = 0x4, scoped, tag = 'scoped memory for tpu_custom_call.1']
    #allocation4 [shape = 's32[1]{0}', space=sflag, size = 0x4, scoped, tag = 'scoped memory for tpu_custom_call.1']
    #allocation5 [shape = 'u8[4096]{0}', space=vmem, size = 0x1000, scoped, tag = 'input window, operand 1, single buffered']
    #allocation6 [shape = 's32[1]{0}', space=sflag, size = 0x4, scoped, tag = 'scoped memory for tpu_custom_call.1']
    #allocation7 [shape = 'u8[8192]{0}', space=vmem, size = 0x2000, scoped, tag = 'input window, operand 2, single buffered']
    #allocation8 [shape = 'u8[8192]{0}', space=vmem, size = 0x2000, scoped, tag = 'input window, operand 3, single buffered']
    #allocation9 [shape = 's32[1]{0}', space=sflag, size = 0x4, scoped, tag = 'scoped memory for tpu_custom_call.1']
    #allocation10 [shape = 'u8[8192]{0}', space=vmem, size = 0x2000, scoped, tag = 'output window, operand 0, single buffered']
    #allocation11 [shape = 'u8[8192]{0}', space=vmem, size = 0x2000, scoped, tag = 'output window, operand 1, single buffered']
    #allocation12 [shape = 's32[1]{0}', space=sflag, size = 0x4, scoped, tag = 'scoped memory for tpu_custom_call.1']
    %11 = vsyncpa [#allocation3], 0
    %12 = vsyncpa [#allocation6], 0
    %13 = vsyncpa [#allocation9], 0
    %14 = vsyncpa [#allocation4], 0
    %15 = vsyncpa [#allocation12], 0
    // Predicated region
    $region2: #{tpu_custom_call.1} parent=1 // pred_check
      _
    $region3: #{tpu_custom_call.1} parent=1 // pred_check_branch
      %17 = sbr.rel (0) target = $region5
    $region4: #{tpu_custom_call.1} parent=1 // pred_region
      %s19 = ssub.s32 128, 128
      %20 = vsyncadd [#allocation3], %s19
      %s22 = sshll.u32 [#allocation2], 4
      %s23 = int_to_ptr.vmem [resolvable:$true] %s22
      %25 = dma.hbm_to_vmem [thread:$0]  %s0, 128, %s23, [#allocation3]
    $region5: #{tpu_custom_call.1} parent=1 // pred_fallthru
      _
    // Predicated region
    $region6: #{tpu_custom_call.1} parent=1 // pred_check
      _
    $region7: #{tpu_custom_call.1} parent=1 // pred_check_branch
      %27 = sbr.rel (0) target = $region9
    $region8: #{tpu_custom_call.1} parent=1 // pred_region
      %s29 = ssub.s32 128, 128
      %30 = vsyncadd [#allocation6], %s29
      %s32 = sshll.u32 [#allocation5], 4
      %s33 = int_to_ptr.vmem [resolvable:$true] %s32
      %35 = dma.hbm_to_vmem [thread:$0]  %s1, 128, %s33, [#allocation6]
    $region9: #{tpu_custom_call.1} parent=1 // pred_fallthru
      _
    // Predicated region
    $region10: #{tpu_custom_call.1} parent=1 // pred_check
      _
    $region11: #{tpu_custom_call.1} parent=1 // pred_check_branch
      %37 = sbr.rel (0) target = $region13
    $region12: #{tpu_custom_call.1} parent=1 // pred_region
      %s39 = ssub.s32 256, 256
      %40 = vsyncadd [#allocation6], %s39
      %s41 = sshll.u32 [#allocation7], 4
      %s42 = int_to_ptr.vmem [resolvable:$true] %s41
      %47 = dma.hbm_to_vmem [thread:$0]  %s2, 256, %s42, [#allocation6], 128, 128, 8
    $region13: #{tpu_custom_call.1} parent=1 // pred_fallthru
      _
    // Predicated region
    $region14: #{tpu_custom_call.1} parent=1 // pred_check
      _
    $region15: #{tpu_custom_call.1} parent=1 // pred_check_branch
      %49 = sbr.rel (0) target = $region17
    $region16: #{tpu_custom_call.1} parent=1 // pred_region
      %s51 = ssub.s32 256, 256
      %52 = vsyncadd [#allocation9], %s51
      %s53 = sshll.u32 [#allocation8], 4
      %s54 = int_to_ptr.vmem [resolvable:$true] %s53
      %59 = dma.hbm_to_vmem [thread:$0]  %s3, 256, %s54, [#allocation9], 128, 128, 8
    $region17: #{tpu_custom_call.1} parent=1 // pred_fallthru
      _
    // Predicated region
    $region18: #{tpu_custom_call.1} parent=1 // pred_check
      _
    $region19: #{tpu_custom_call.1} parent=1 // pred_check_branch
      %61 = sbr.rel (0) target = $region21
    $region20: #{tpu_custom_call.1} parent=1 // pred_region
      %62 = dma.done [#allocation3], 128
    $region21: #{tpu_custom_call.1} parent=1 // pred_fallthru
      _
    // Predicated region
    $region22: #{tpu_custom_call.1} parent=1 // pred_check
      _
    $region23: #{tpu_custom_call.1} parent=1 // pred_check_branch
      %64 = sbr.rel (0) target = $region25
    $region24: #{tpu_custom_call.1} parent=1 // pred_region
      %65 = dma.done [#allocation6], 128
    $region25: #{tpu_custom_call.1} parent=1 // pred_fallthru
      _
    // Predicated region
    $region26: #{tpu_custom_call.1} parent=1 // pred_check
      _
    $region27: #{tpu_custom_call.1} parent=1 // pred_check_branch
      %67 = sbr.rel (0) target = $region29
    $region28: #{tpu_custom_call.1} parent=1 // pred_region
      %68 = dma.done [#allocation6], 256
    $region29: #{tpu_custom_call.1} parent=1 // pred_fallthru
      _
    // Predicated region
    $region30: #{tpu_custom_call.1} parent=1 // pred_check
      _
    $region31: #{tpu_custom_call.1} parent=1 // pred_check_branch
      %70 = sbr.rel (0) target = $region33
    $region32: #{tpu_custom_call.1} parent=1 // pred_region
      %71 = dma.done [#allocation9], 256
    $region33: #{tpu_custom_call.1} parent=1 // pred_fallthru
      _
    %v72 = vld [vmem:[#allocation2] sm:$0xff]
    %v73 = vld [vmem:[#allocation5] sm:$0xff]
    %74 = vrot.lane.b32.xlu0 %v73, 1
    %v75 = vpop.permute.xlu0 %74
    %v76 = vsub.f32 0.0, %v75
    %v77 = vld [vmem:[#allocation7] sm:$0xff]
    %v78 = vld [vmem:[#allocation7 + $0x8] sm:$0xff]
    %v79 = vmul.f32 %v77, %v72
    %v80 = vmul.f32 %v78, %v72
    %81 = vrot.lane.b32.xlu0 %v77, 127
    %v82 = vpop.permute.xlu0 %81
    %83 = vrot.lane.b32.xlu0 %v78, 127
    %v84 = vpop.permute.xlu0 %83
    %v85 = vmul.f32 %v82, %v73
    %v86 = vmul.f32 %v84, %v73
    %v87 = vadd.f32 %v79, %v85
    %v88 = vadd.f32 %v80, %v86
    %89 = vrot.lane.b32.xlu0 %v77, 1
    %v90 = vpop.permute.xlu0 %89
    %91 = vrot.lane.b32.xlu0 %v78, 1
    %v92 = vpop.permute.xlu0 %91
    %v93 = vmul.f32 %v90, %v76
    %v94 = vmul.f32 %v92, %v76
    %v95 = vadd.f32 %v87, %v93
    %v96 = vadd.f32 %v88, %v94
    %97 = vst [vmem:[#allocation10] sm:$0xff] %v95
    %98 = vst [vmem:[#allocation10 + $0x8] sm:$0xff] %v96
    %v99 = vld [vmem:[#allocation8] sm:$0xff]
    %v100 = vld [vmem:[#allocation8 + $0x8] sm:$0xff]
    %v101 = vmul.f32 %v99, %v72
    %v102 = vmul.f32 %v100, %v72
    %103 = vrot.lane.b32.xlu0 %v99, 127
    %v104 = vpop.permute.xlu0 %103
    %105 = vrot.lane.b32.xlu0 %v100, 127
    %v106 = vpop.permute.xlu0 %105
    %v107 = vmul.f32 %v104, %v73
    %v108 = vmul.f32 %v106, %v73
    %v109 = vadd.f32 %v101, %v107
    %v110 = vadd.f32 %v102, %v108
    %111 = vrot.lane.b32.xlu0 %v99, 1
    %v112 = vpop.permute.xlu0 %111
    %113 = vrot.lane.b32.xlu0 %v100, 1
    %v114 = vpop.permute.xlu0 %113
    %v115 = vmul.f32 %v112, %v76
    %v116 = vmul.f32 %v114, %v76
    %v117 = vadd.f32 %v109, %v115
    %v118 = vadd.f32 %v110, %v116
    %119 = vst [vmem:[#allocation11] sm:$0xff] %v117
    %120 = vst [vmem:[#allocation11 + $0x8] sm:$0xff] %v118
    // Predicated region
    $region34: #{tpu_custom_call.1} parent=1 // pred_check
      _
    $region35: #{tpu_custom_call.1} parent=1 // pred_check_branch
      %122 = sbr.rel (0) target = $region37
    $region36: #{tpu_custom_call.1} parent=1 // pred_region
      %s124 = ssub.s32 256, 256
      %125 = vsyncadd [#allocation4], %s124
      %s126 = sshll.u32 [#allocation10], 4
      %s127 = int_to_ptr.vmem [resolvable:$true] %s126
      %132 = dma.vmem_to_hbm [thread:$0]  %s127, 256, %s4, [#allocation4], 128, 128, 8
    $region37: #{tpu_custom_call.1} parent=1 // pred_fallthru
      _
    // Predicated region
    $region38: #{tpu_custom_call.1} parent=1 // pred_check
      _
    $region39: #{tpu_custom_call.1} parent=1 // pred_check_branch
      %134 = sbr.rel (0) target = $region41
    $region40: #{tpu_custom_call.1} parent=1 // pred_region
      %s136 = ssub.s32 256, 256
      %137 = vsyncadd [#allocation12], %s136
      %s138 = sshll.u32 [#allocation11], 4
      %s139 = int_to_ptr.vmem [resolvable:$true] %s138
      %144 = dma.vmem_to_hbm [thread:$0]  %s139, 256, %s5, [#allocation12], 128, 128, 8
    $region41: #{tpu_custom_call.1} parent=1 // pred_fallthru
      _
    // Predicated region
    $region42: #{tpu_custom_call.1} parent=1 // pred_check
      _
    $region43: #{tpu_custom_call.1} parent=1 // pred_check_branch
      %146 = sbr.rel (0) target = $region45
    $region44: #{tpu_custom_call.1} parent=1 // pred_region
      %147 = dma.done [#allocation4], 256
    $region45: #{tpu_custom_call.1} parent=1 // pred_fallthru
      _
    // Predicated region
    $region46: #{tpu_custom_call.1} parent=1 // pred_check
      _
    $region47: #{tpu_custom_call.1} parent=1 // pred_check_branch
      %149 = sbr.rel (0) target = $region49
    $region48: #{tpu_custom_call.1} parent=1 // pred_region
      %150 = dma.done [#allocation12], 256
    $region49: #{tpu_custom_call.1} parent=1 // pred_fallthru
      _
    %151 = vsyncpa [#allocation3], 1
    %152 = vsyncpa [#allocation6], 1
    %153 = vsyncpa [#allocation9], 1
    %154 = vsyncpa [#allocation4], 1
    %155 = vsyncpa [#allocation12], 1

</llo_original>
